<compile_context>
chip_gen: v7x
topology: tpu7x:2x2x1
jax: 0.10.0
libtpu: 0.0.40
codegen_flags: <defaults>
</compile_context>

<pallas_src>
import functools

import jax
import jax.numpy as jnp
from jax.experimental import pallas as pl
from jax.experimental.pallas import tpu as pltpu


def _linear_hardswish_kernel(x_ref, w_ref, b_ref, o_ref):
    # Hot path: matmul on the MXU (f32 accumulate) + hardswish on the VPU.
    x = x_ref[...]                      # (tm, K)   streamed per grid step
    w = w_ref[...]                      # (K, N)    VMEM-resident across steps
    b = b_ref[...]                      # (1, N)    VMEM-resident across steps
    y1 = jnp.dot(x, w, preferred_element_type=jnp.float32) + b
    y2 = y1 * jnp.clip(y1 + 3.0, 0.0, 6.0)
    o_ref[...] = (y2 * (1.0 / 6.0)).astype(o_ref.dtype)


def prepare_params(weight, bias):
    """One-time prep: PyTorch (N, K) weight -> (K, N), bias -> (1, N)."""
    return weight.T, bias.reshape(1, -1)


def _round_up(v, m):
    return ((v + m - 1) // m) * m


@functools.partial(jax.jit, static_argnames=("tile_m", "out_dtype"))
def linear_hardswish(x, w_t, b2d, *, tile_m=8192, out_dtype=jnp.bfloat16):
    """x: (M, K), w_t: (K, N) pre-transposed, b2d: (1, N). Returns (M, N)."""
    M, K = x.shape
    N = w_t.shape[1]

    # ---- tile selection -------------------------------------------------
    # VMEM budget (double-buffered): x block is lane-padded to 128 lanes, so
    # it costs 128*itemsize bytes/row per buffer, same order as the output.
    tile_m = max(8, (tile_m // 8) * 8)
    if M <= 256:
        # Tiny batch: one full-dim block (always layout-legal); per-step
        # overhead dominates anyway -- see model_forward for the XLA gate.
        tm = M
    else:
        # Keep >= 2 grid steps so ("parallel",) can use both v7x TensorCores.
        half = _round_up(pl.cdiv(M, 2), 8)
        tm = min(tile_m, half)
    grid = (pl.cdiv(M, tm),)

    # Explicit scoped-VMEM limit with corrected accounting + headroom so the
    # big-tile config also compiles on v5e (16 MiB default) and v7x (64 MiB
    # physical).
    bytes_per_row = 128 * x.dtype.itemsize + 128 * jnp.dtype(out_dtype).itemsize
    vmem_needed = 2 * tm * bytes_per_row + 2 * (K * N + N) * 4 + (1 << 20)
    vmem_limit = int(min(max(vmem_needed, 16 << 20), 48 << 20))

    return pl.pallas_call(
        _linear_hardswish_kernel,
        out_shape=jax.ShapeDtypeStruct((M, N), out_dtype),
        grid=grid,
        in_specs=[
            pl.BlockSpec((tm, K), lambda i: (i, 0)),   # x: streamed per tile
            pl.BlockSpec((K, N), lambda i: (0, 0)),    # weight: resident
            pl.BlockSpec((1, N), lambda i: (0, 0)),    # bias: resident
        ],
        out_specs=pl.BlockSpec((tm, N), lambda i: (i, 0)),
        compiler_params=pltpu.CompilerParams(
            dimension_semantics=("parallel",),         # megacore on v7x
            vmem_limit_bytes=vmem_limit,
        ),
    )(x, w_t, b2d)


def model_forward(x, w_t, b2d, *, out_dtype=jnp.bfloat16, min_pallas_rows=512):
    """Gated entry point: tiny batches (like the shipped M=8) go through plain
    fused XLA (dot + hardswish) where pallas_call fixed overhead would dominate;
    large batches use the Pallas kernel."""
    if x.shape[0] < min_pallas_rows:
        y1 = x @ w_t + b2d
        return (y1 * jnp.clip(y1 + 3.0, 0.0, 6.0) / 6.0).astype(out_dtype)
    return linear_hardswish(x, w_t, b2d, out_dtype=out_dtype)


def reference(x, weight, bias):
    y1 = x @ weight.T + bias
    y2 = y1 * jnp.clip(y1 + 3.0, 0.0, 6.0)
    return y2 / 6.0


if __name__ == "__main__":
    key = jax.random.PRNGKey(0)
    k_x, k_w, k_b, k_x2 = jax.random.split(key, 4)

    in_features, out_features = 8, 128
    batch = 8

    # PyTorch-style Linear init: U(-1/sqrt(K), 1/sqrt(K)).
    bound = 1.0 / (in_features ** 0.5)
    weight = jax.random.uniform(
        k_w, (out_features, in_features), jnp.float32, minval=-bound, maxval=bound)
    bias = jax.random.uniform(
        k_b, (out_features,), jnp.float32, minval=-bound, maxval=bound)

    # Input implied by Linear(8, 128): (batch, 8).
    x = jax.random.normal(k_x, (batch, in_features), jnp.float32)

    # One-time parameter preparation (transpose hoisted out of the hot call).
    w_t, b2d = prepare_params(weight, bias)

    # --- f32 path: bit-matches the PyTorch module --------------------------
    out_f32 = jax.block_until_ready(
        linear_hardswish(x, w_t, b2d, out_dtype=jnp.float32))
    ref = reference(x, weight, bias)
    assert out_f32.shape == (batch, out_features)
    assert jnp.allclose(out_f32, ref, atol=1e-5, rtol=1e-5)

    # --- bf16 path (recommended hot-path default: halves the write stream) --
    out_bf16 = jax.block_until_ready(linear_hardswish(x, w_t, b2d))
    assert out_bf16.dtype == jnp.bfloat16
    assert jnp.allclose(out_bf16.astype(jnp.float32), ref, atol=5e-2, rtol=3e-2)

    # --- multi-step tiled path (exercises grid >= 2 / partial-block handling) --
    M2 = 1024
    x2 = jax.random.normal(k_x2, (M2, in_features), jnp.float32)
    out2 = jax.block_until_ready(linear_hardswish(x2, w_t, b2d))
    ref2 = reference(x2, weight, bias)
    assert out2.shape == (M2, out_features)
    assert jnp.allclose(out2.astype(jnp.float32), ref2, atol=5e-2, rtol=3e-2)

    print("KERNEL_OK")
</pallas_src>

<mosaic_0001>
module attributes {stable_mosaic.version = 11 : i64} {
  func.func @_linear_hardswish_kernel(%arg0: i32, %arg1: memref<8x8xf32, #tpu.memory_space<vmem>>, %arg2: memref<8x128xf32, #tpu.memory_space<vmem>>, %arg3: memref<1x128xf32, #tpu.memory_space<vmem>>, %arg4: memref<8x128xf32, #tpu.memory_space<vmem>>) attributes {dimension_semantics = [#tpu.dimension_semantics<parallel>], iteration_bounds = array<i64: 1>, scalar_prefetch = 0 : i64, scratch_operands = 0 : i64, tpu.core_type = #tpu.core_type<tc>, window_params = [{transform_indices = @transform_0, window_bounds = array<i64: 8, 8>}, {pipeline_mode = #tpu.pipeline_mode<synchronous>, transform_indices = @transform_1, window_bounds = array<i64: 8, 128>}, {pipeline_mode = #tpu.pipeline_mode<synchronous>, transform_indices = @transform_2, window_bounds = array<i64: 1, 128>}, {transform_indices = @transform_3, window_bounds = array<i64: 8, 128>}]} {
    %c0 = arith.constant 0 : index
    %c0_0 = arith.constant 0 : index
    %0 = vector.load %arg1[%c0, %c0_0] : memref<8x8xf32, #tpu.memory_space<vmem>>, vector<8x8xf32>
    %c0_1 = arith.constant 0 : index
    %c0_2 = arith.constant 0 : index
    %1 = vector.load %arg2[%c0_1, %c0_2] : memref<8x128xf32, #tpu.memory_space<vmem>>, vector<8x128xf32>
    %c0_3 = arith.constant 0 : index
    %c0_4 = arith.constant 0 : index
    %2 = vector.load %arg3[%c0_3, %c0_4] : memref<1x128xf32, #tpu.memory_space<vmem>>, vector<1x128xf32>
    %cst = arith.constant dense<0.000000e+00> : vector<8x128xf32>
    %3 = tpu.matmul %0, %1, %cst {dimension_numbers = #tpu.dot_dimension_numbers<[1], [0], [0], [1], [0, 0, 1, 1], [], []>} : vector<8x8xf32>, vector<8x128xf32>, vector<8x128xf32> -> vector<8x128xf32>
    %4 = vector.broadcast %2 : vector<1x128xf32> to vector<8x128xf32>
    %5 = arith.addf %3, %4 : vector<8x128xf32>
    %cst_5 = arith.constant 3.000000e+00 : f32
    %6 = vector.broadcast %cst_5 : f32 to vector<8x128xf32>
    %7 = arith.addf %5, %6 : vector<8x128xf32>
    %cst_6 = arith.constant 0.000000e+00 : f32
    %cst_7 = arith.constant 6.000000e+00 : f32
    %8 = vector.broadcast %cst_6 : f32 to vector<8x128xf32>
    %9 = arith.maximumf %8, %7 : vector<8x128xf32>
    %10 = vector.broadcast %cst_7 : f32 to vector<8x128xf32>
    %11 = arith.minimumf %10, %9 : vector<8x128xf32>
    %12 = arith.mulf %5, %11 : vector<8x128xf32>
    %cst_8 = arith.constant 0.166666672 : f32
    %13 = vector.broadcast %cst_8 : f32 to vector<8x128xf32>
    %14 = arith.mulf %12, %13 : vector<8x128xf32>
    %c0_9 = arith.constant 0 : index
    %c0_10 = arith.constant 0 : index
    %15 = vector.load %arg4[%c0_9, %c0_10] : memref<8x128xf32, #tpu.memory_space<vmem>>, vector<8x128xf32>
    tpu.vector_store %arg4[%c0_9, %c0_10], %14 {strides = array<i32>} : memref<8x128xf32, #tpu.memory_space<vmem>>, vector<8x128xf32>,
    return
  }
  func.func @transform_0(%arg0: i32) -> (i32, i32) {
    %c0_i32 = arith.constant 0 : i32
    %c0_i32_0 = arith.constant 0 : i32
    return %arg0, %c0_i32 : i32, i32
  }
  func.func @transform_1(%arg0: i32) -> (i32, i32) {
    %c0_i32 = arith.constant 0 : i32
    %c0_i32_0 = arith.constant 0 : i32
    %c0_i32_1 = arith.constant 0 : i32
    return %c0_i32, %c0_i32_0 : i32, i32
  }
  func.func @transform_2(%arg0: i32) -> (i32, i32) {
    %c0_i32 = arith.constant 0 : i32
    %c0_i32_0 = arith.constant 0 : i32
    %c0_i32_1 = arith.constant 0 : i32
    return %c0_i32, %c0_i32_0 : i32, i32
  }
  func.func @transform_3(%arg0: i32) -> (i32, i32) {
    %c0_i32 = arith.constant 0 : i32
    %c0_i32_0 = arith.constant 0 : i32
    return %arg0, %c0_i32 : i32, i32
  }
}

</mosaic_0001>

<llo_original>
// kernel: linear_hardswish.1
$region0: #{linear_hardswish.1}
  #allocation0 [shape = 'u32[]', space=smem, size = 0x4, offset = 0x4, fixed_abs, tag = 'smem constant byte address 0x4 - core index']
  #allocation1 [shape = 'u32[144,128]{1,0:T(1,128)}', space=vmem, size = 0x12000, scoped, tag = 'internal scratch']
  %s0 = inlined_call_operand.hbm [shape: f32[8,8], index: 0, kind: input, shape index: {}]
  %s1 = inlined_call_operand.hbm [shape: f32[8,128], index: 1, kind: input, shape index: {}]
  %s2 = inlined_call_operand.vmem [shape: f32[1,128], index: 2, kind: input, shape index: {}]
  %s3 = inlined_call_operand.hbm [shape: f32[8,128], index: 3, kind: output, shape index: {}]
  %s4 = sld [smem:[#allocation0]]
  $region30: #{linear_hardswish.1} parent=0
    _
  %s6 = ssub.s32 1, %s4
  %s7 = scalar_select 0, %s6, %s4
  $region1: #{linear_hardswish.1} parent=0
    #allocation2 [shape = 'u8[4096]{0}', space=vmem, size = 0x1000, scoped, tag = 'input window, operand 0, single buffered']
    #allocation3 [shape = 's32[1]{0}', space=sflag, size = 0x4, scoped, tag = 'scoped memory for linear_hardswish.1']
    #allocation4 [shape = 's32[1]{0}', space=sflag, size = 0x4, scoped, tag = 'scoped memory for linear_hardswish.1']
    #allocation5 [shape = 'u8[4096]{0}', space=vmem, size = 0x1000, scoped, tag = 'input window, operand 1, single buffered']
    #allocation6 [shape = 's32[1]{0}', space=sflag, size = 0x4, scoped, tag = 'scoped memory for linear_hardswish.1']
    #allocation7 [shape = 'u8[4096]{0}', space=vmem, size = 0x1000, scoped, tag = 'output window, operand 0, single buffered']
    %8 = vsyncpa [#allocation3], 0
    %9 = vsyncpa [#allocation6], 0
    %10 = vsyncpa [#allocation4], 0
    // Predicated region
    $region2: #{linear_hardswish.1} parent=1 // pred_check
      _
    $region3: #{linear_hardswish.1} parent=1 // pred_check_branch
      %12 = sbr.rel (0) target = $region5
    $region4: #{linear_hardswish.1} parent=1 // pred_region
      %s14 = ssub.s32 128, 128
      %15 = vsyncadd [#allocation3], %s14
      %s17 = sshll.u32 [#allocation2], 4
      %s18 = int_to_ptr.vmem [resolvable:$true] %s17
      %20 = dma.hbm_to_vmem [thread:$0]  %s0, 128, %s18, [#allocation3]
    $region5: #{linear_hardswish.1} parent=1 // pred_fallthru
      _
    // Predicated region
    $region6: #{linear_hardswish.1} parent=1 // pred_check
      _
    $region7: #{linear_hardswish.1} parent=1 // pred_check_branch
      %22 = sbr.rel (0) target = $region9
    $region8: #{linear_hardswish.1} parent=1 // pred_region
      %s24 = ssub.s32 128, 128
      %25 = vsyncadd [#allocation6], %s24
      %s27 = sshll.u32 [#allocation5], 4
      %s28 = int_to_ptr.vmem [resolvable:$true] %s27
      %30 = dma.hbm_to_vmem [thread:$0]  %s1, 128, %s28, [#allocation6]
    $region9: #{linear_hardswish.1} parent=1 // pred_fallthru
      _
    // Predicated region
    $region10: #{linear_hardswish.1} parent=1 // pred_check
      _
    $region11: #{linear_hardswish.1} parent=1 // pred_check_branch
      %32 = sbr.rel (0) target = $region13
    $region12: #{linear_hardswish.1} parent=1 // pred_region
      _
    $region13: #{linear_hardswish.1} parent=1 // pred_fallthru
      _
    // Predicated region
    $region14: #{linear_hardswish.1} parent=1 // pred_check
      _
    $region15: #{linear_hardswish.1} parent=1 // pred_check_branch
      %34 = sbr.rel (0) target = $region17
    $region16: #{linear_hardswish.1} parent=1 // pred_region
      %35 = dma.done [#allocation3], 128
    $region17: #{linear_hardswish.1} parent=1 // pred_fallthru
      _
    // Predicated region
    $region18: #{linear_hardswish.1} parent=1 // pred_check
      _
    $region19: #{linear_hardswish.1} parent=1 // pred_check_branch
      %37 = sbr.rel (0) target = $region21
    $region20: #{linear_hardswish.1} parent=1 // pred_region
      %38 = dma.done [#allocation6], 128
    $region21: #{linear_hardswish.1} parent=1 // pred_fallthru
      _
    %v39 = vld [vmem:[#allocation2] sm:$0xff]
    %v40 = vld [vmem:[#allocation5] sm:$0xff]
    %v41 = vld [vmem:[%s2] sm:$0x1]
    %v43 = vlaneseq
    %v44 = vshrl.u32 %v43, 7
    %v45 = vsub.s32 0, %v44
    %v46 = vrot.slane %v41, %v45
    %vm48 = vcmask 64512
    %v50 = vsel %vm48, %v39, 0
    %52 = vmatprep.subr.mxu0 0.0
    %53 = vmatpush1.msra.mxu0 %v40
    %54 = vmatprep.subr.mxu0 0.0
    %55 = vmatpush1.msra.mxu0 0.0
    %56 = vmatprep.subr.mxu0 0.0
    %57 = vmatpush1.msra.mxu0 0.0
    %58 = vmatprep.subr.mxu0 0.0
    %59 = vmatpush1.msra.mxu0 0.0
    %60 = vmatprep.subr.mxu0 0.0
    %61 = vmatpush1.msra.mxu0 0.0
    %62 = vmatprep.subr.mxu0 0.0
    %63 = vmatpush1.msra.mxu0 0.0
    %64 = vmatprep.subr.mxu0 0.0
    %65 = vmatpush1.msra.mxu0 0.0
    %66 = vmatprep.subr.mxu0 0.0
    %67 = vmatpush1.msra.mxu0 0.0
    %68 = vmatprep.subr.mxu0 0.0
    %69 = vmatpush1.msra.mxu0 0.0
    %70 = vmatprep.subr.mxu0 0.0
    %71 = vmatpush1.msra.mxu0 0.0
    %72 = vmatprep.subr.mxu0 0.0
    %73 = vmatpush1.msra.mxu0 0.0
    %74 = vmatprep.subr.mxu0 0.0
    %75 = vmatpush1.msra.mxu0 0.0
    %76 = vmatprep.subr.mxu0 0.0
    %77 = vmatpush1.msra.mxu0 0.0
    %78 = vmatprep.subr.mxu0 0.0
    %79 = vmatpush1.msra.mxu0 0.0
    %80 = vmatprep.subr.mxu0 0.0
    %81 = vmatpush1.msra.mxu0 0.0
    %82 = vmatprep.subr.mxu0 0.0
    %83 = vmatpush1.msra.mxu0 0.0
    %84 = vmatprep.subr.mxu0 0.0
    %85 = vmatpush1.msra.mxu0 0.0
    %86 = vmatprep.subr.mxu0 0.0
    %87 = vmatpush1.msra.mxu0 0.0
    %88 = vmatprep.subr.mxu0 0.0
    %89 = vmatpush1.msra.mxu0 0.0
    %90 = vmatprep.subr.mxu0 0.0
    %91 = vmatpush1.msra.mxu0 0.0
    %92 = vmatprep.subr.mxu0 0.0
    %93 = vmatpush1.msra.mxu0 0.0
    %94 = vmatprep.subr.mxu0 0.0
    %95 = vmatpush1.msra.mxu0 0.0
    %96 = vmatprep.subr.mxu0 0.0
    %97 = vmatpush1.msra.mxu0 0.0
    %98 = vmatprep.subr.mxu0 0.0
    %99 = vmatpush1.msra.mxu0 0.0
    %100 = vmatprep.subr.mxu0 0.0
    %101 = vmatpush1.msra.mxu0 0.0
    %102 = vmatprep.subr.mxu0 0.0
    %103 = vmatpush1.msra.mxu0 0.0
    %104 = vmatprep.subr.mxu0 0.0
    %105 = vmatpush1.msra.mxu0 0.0
    %106 = vmatprep.subr.mxu0 0.0
    %107 = vmatpush1.msra.mxu0 0.0
    %108 = vmatprep.subr.mxu0 0.0
    %109 = vmatpush1.msra.mxu0 0.0
    %110 = vmatprep.subr.mxu0 0.0
    %111 = vmatpush1.msra.mxu0 0.0
    %112 = vmatprep.subr.mxu0 0.0
    %113 = vmatpush1.msra.mxu0 0.0
    %114 = vmatprep.subr.mxu0 0.0
    %115 = vmatpush1.msra.mxu0 0.0
    %116 = vmatprep.mubr.f32.mxu0 0.0
    %117 = vmatmul.mubr.f32.gmra.mrb[0].mxu0 %v50
    %v118 = vpop.f32.mrb[0].mxu0
    %v119 = vadd.f32 %v46, %v118
    %v120 = vpop.f32.mrb[0].mxu0
    %121 = vdwg.mxu0
    %v122 = vadd.f32 %v119, 3.0
    %v123 = vmax.f32 %v122, 0.0
    %v124 = vmin.f32 %v123, 6.0
    %v125 = vmul.f32 %v119, %v124
    %v126 = vmul.f32 %v125, 0.16666667
    %127 = vst [vmem:[#allocation7] sm:$0xff] %v126
    // Predicated region
    $region22: #{linear_hardswish.1} parent=1 // pred_check
      _
    $region23: #{linear_hardswish.1} parent=1 // pred_check_branch
      %129 = sbr.rel (0) target = $region25
    $region24: #{linear_hardswish.1} parent=1 // pred_region
      %s131 = ssub.s32 128, 128
      %132 = vsyncadd [#allocation4], %s131
      %s134 = sshll.u32 [#allocation7], 4
      %s135 = int_to_ptr.vmem [resolvable:$true] %s134
      %137 = dma.vmem_to_hbm [thread:$0]  %s135, 128, %s3, [#allocation4]
    $region25: #{linear_hardswish.1} parent=1 // pred_fallthru
      _
    // Predicated region
    $region26: #{linear_hardswish.1} parent=1 // pred_check
      _
    $region27: #{linear_hardswish.1} parent=1 // pred_check_branch
      %139 = sbr.rel (0) target = $region29
    $region28: #{linear_hardswish.1} parent=1 // pred_region
      %140 = dma.done [#allocation4], 128
    $region29: #{linear_hardswish.1} parent=1 // pred_fallthru
      _
    %141 = vsyncpa [#allocation3], 1
    %142 = vsyncpa [#allocation6], 1
    %143 = vsyncpa [#allocation4], 1

</llo_original>
